<compile_context>
chip_gen: v7x
topology: tpu7x:2x2x1
jax: 0.10.0
libtpu: 0.0.40
codegen_flags: <defaults>
</compile_context>

<pallas_src>
import functools

import jax
import jax.numpy as jnp
import numpy as np
from jax.experimental import pallas as pl
from jax.experimental.pallas import tpu as pltpu


def _round_up(x, m):
    return ((x + m - 1) // m) * m


def resblock_kernel(
    x_ref,      # (1, tile_T, C)       residual input tile
    h_ref,      # (1, tile_T, Ca)      aux (conditioning) input tile
    wconv_ref,  # (K*C + Ca, 2C)       packed rows [tap0..tapK-1 | aux] x cols [filter | gate]
    baux_ref,   # (1, 2C)              packed aux biases [filter | gate]
    wp_ref,     # (C, C)               permute 1x1 weight
    bp_ref,     # (1, C)               permute bias
    ws_ref,     # (C, Cs)              skip 1x1 weight
    bs_ref,     # (1, Cs)              skip bias
    out_ref,    # (1, tile_T, C+Cs)    lane-dense [output | skip] slab
    carry_ref,  # (halo, C)            causal history carried between T tiles
    *,
    kernel_size,
    dilation,
):
    K = kernel_size
    d = dilation
    pad = (K - 1) * d                 # causal receptive field minus current sample
    tile_t = x_ref.shape[1]
    C = x_ref.shape[2]
    halo = carry_ref.shape[0]         # pad rounded up to a sublane multiple

    t = pl.program_id(1)
    x = x_ref[0]                      # (tile_T, C)

    if pad > 0:
        # First T tile of every batch element starts from silence (causal zeros).
        @pl.when(t == 0)
        def _():
            carry_ref[...] = jnp.zeros_like(carry_ref)

        window = jnp.concatenate([carry_ref[...], x], axis=0)   # (halo+tile_T, C)
        # Hand the trailing history rows to the next T tile of this batch element.
        carry_ref[...] = window[tile_t:, :]
        off = halo - pad
    else:
        window = x
        off = 0

    # Lane-stack the K dilated causal taps AND the conditioning h, so the whole
    # gated pre-activation (filter conv + gate conv + aux_filter + aux_gate) is
    # a single wide MXU matmul with contraction K*C + Ca.
    pieces = [window[off + k * d: off + k * d + tile_t, :] for k in range(K)]
    pieces.append(h_ref[0])
    xh = jnp.concatenate(pieces, axis=-1)                        # (tile_T, K*C+Ca)

    pre = jnp.dot(xh, wconv_ref[...],
                  preferred_element_type=jnp.float32) + baux_ref[...]   # (tile_T, 2C)
    z = jnp.tanh(pre[:, :C]) * jax.nn.sigmoid(pre[:, C:])

    output = (jnp.dot(z, wp_ref[...], preferred_element_type=jnp.float32)
              + bp_ref[...] + x.astype(jnp.float32))             # residual connection
    skip = (jnp.dot(output, ws_ref[...], preferred_element_type=jnp.float32)
            + bs_ref[...])

    out_ref[0] = jnp.concatenate([output, skip], axis=-1).astype(out_ref.dtype)


def resblock_forward(x_btc, h_btc, params, *, kernel_size, dilation, tile_t=512):
    """x_btc: (B, T, C), h_btc: (B, T, Ca). Returns (output, skip) in (B, T, *)."""
    B, T, C = x_btc.shape
    Ca = h_btc.shape[2]
    Cs = params["ws"].shape[1]
    K = kernel_size
    pad = (K - 1) * dilation

    # --- Time tiling: multiple of 8 sublanes, clamped to the (padded) T. ---
    # tile_t ~ 512-2048 amortizes the ~0.35 us per-grid-step overhead; the
    # double-buffered working set stays well inside v7x's 64 MiB VMEM.
    tile_t = max(8, (int(tile_t) // 8) * 8)
    tile_t = min(tile_t, _round_up(T, 8))
    t_pad = _round_up(T, tile_t)
    n_t = t_pad // tile_t

    if t_pad != T:
        x_btc = jnp.pad(x_btc, ((0, 0), (0, t_pad - T), (0, 0)))
        h_btc = jnp.pad(h_btc, ((0, 0), (0, t_pad - T), (0, 0)))

    # --- Pack weights (layout-only glue; all conv compute stays in-kernel). ---
    # rows: [tap0 (C), ..., tapK-1 (C), aux (Ca)]; cols: [filter (C) | gate (C)].
    wfg = jnp.concatenate([params["wf"], params["wg"]], axis=-1).reshape(K * C, 2 * C)
    waux = jnp.concatenate([params["waf"], params["wag"]], axis=-1)      # (Ca, 2C)
    wconv = jnp.concatenate([wfg, waux], axis=0)                         # (K*C+Ca, 2C)
    baux = jnp.concatenate([params["baf"], params["bag"]], axis=-1)      # (1, 2C)

    halo = _round_up(pad, 8) if pad > 0 else 8

    kernel = functools.partial(resblock_kernel, kernel_size=K, dilation=dilation)

    grid_spec = pltpu.PrefetchScalarGridSpec(
        num_scalar_prefetch=0,
        grid=(B, n_t),
        in_specs=[
            pl.BlockSpec((1, tile_t, C), lambda b, t: (b, t, 0)),        # x
            pl.BlockSpec((1, tile_t, Ca), lambda b, t: (b, t, 0)),       # h
            # Weights: constant index_map -> fetched once, VMEM-resident.
            pl.BlockSpec((K * C + Ca, 2 * C), lambda b, t: (0, 0)),      # wconv
            pl.BlockSpec((1, 2 * C), lambda b, t: (0, 0)),               # baux
            pl.BlockSpec((C, C), lambda b, t: (0, 0)),                   # wp
            pl.BlockSpec((1, C), lambda b, t: (0, 0)),                   # bp
            pl.BlockSpec((C, Cs), lambda b, t: (0, 0)),                  # ws
            pl.BlockSpec((1, Cs), lambda b, t: (0, 0)),                  # bs
        ],
        out_specs=pl.BlockSpec((1, tile_t, C + Cs), lambda b, t: (b, t, 0)),
        scratch_shapes=[pltpu.VMEM((halo, C), x_btc.dtype)],
    )

    slab = pl.pallas_call(
        kernel,
        grid_spec=grid_spec,
        out_shape=jax.ShapeDtypeStruct((B, t_pad, C + Cs), x_btc.dtype),
        compiler_params=pltpu.CompilerParams(
            # B is embarrassingly parallel (both v7x TensorCores busy for B>=2);
            # the T axis carries the causal halo, so it stays sequential.
            dimension_semantics=("parallel", "arbitrary"),
            vmem_limit_bytes=32 * 1024 * 1024,
        ),
    )(
        x_btc, h_btc, wconv, baux,
        params["wp"], params["bp"], params["ws"], params["bs"],
    )

    output = slab[:, :T, :C]
    skip = slab[:, :T, C:]
    return output, skip


def reference_forward(x_btc, h_btc, params, *, kernel_size, dilation):
    """Pure-JAX reference of the PyTorch forward (for correctness check)."""
    B, T, C = x_btc.shape
    pad = (kernel_size - 1) * dilation
    x_pad = jnp.pad(x_btc, ((0, 0), (pad, 0), (0, 0)))
    acc_f = jnp.zeros((B, T, C), jnp.float32)
    acc_g = jnp.zeros((B, T, C), jnp.float32)
    for k in range(kernel_size):
        xs = x_pad[:, k * dilation:k * dilation + T, :]
        acc_f += jnp.einsum("btc,cd->btd", xs, params["wf"][k])
        acc_g += jnp.einsum("btc,cd->btd", xs, params["wg"][k])
    aux_f = jnp.einsum("bta,ac->btc", h_btc, params["waf"]) + params["baf"]
    aux_g = jnp.einsum("bta,ac->btc", h_btc, params["wag"]) + params["bag"]
    z = jnp.tanh(acc_f + aux_f) * jax.nn.sigmoid(acc_g + aux_g)
    output = jnp.einsum("btc,cd->btd", z, params["wp"]) + params["bp"] + x_btc
    skip = jnp.einsum("btc,cd->btd", output, params["ws"]) + params["bs"]
    return output, skip


def make_params(key, K, C, Ca, Cs):
    ks = jax.random.split(key, 10)
    s = 0.1
    # PyTorch Conv1d weight (Cout, Cin, K) is stored here tap-major as
    # (K, Cin, Cout) for direct matmul use (pure layout permutation).
    return {
        "wf": s * jax.random.normal(ks[0], (K, C, C), jnp.float32),
        "wg": s * jax.random.normal(ks[1], (K, C, C), jnp.float32),
        "waf": s * jax.random.normal(ks[2], (Ca, C), jnp.float32),
        "baf": s * jax.random.normal(ks[3], (1, C), jnp.float32),
        "wag": s * jax.random.normal(ks[4], (Ca, C), jnp.float32),
        "bag": s * jax.random.normal(ks[5], (1, C), jnp.float32),
        "wp": s * jax.random.normal(ks[6], (C, C), jnp.float32),
        "bp": s * jax.random.normal(ks[7], (1, C), jnp.float32),
        "ws": s * jax.random.normal(ks[8], (C, Cs), jnp.float32),
        "bs": s * jax.random.normal(ks[9], (1, Cs), jnp.float32),
    }


if __name__ == "__main__":
    # Small shapes consistent with the module's forward:
    #   x: (B, n_channels, T), h: (B, aux_channels, T)  [PyTorch NCL]
    B = 2
    n_channels = 32
    aux_channels = 16
    skip_channels = 32
    T = 200                 # deliberately not a multiple of the time tile
    tile_t = 64             # small tile so the demo exercises T tiling + halo carry

    key = jax.random.PRNGKey(0)
    kp, kx, kh = jax.random.split(key, 3)

    # Inputs in PyTorch NCL layout, transposed to (B, T, C) for the kernel.
    x_ncl = jax.random.normal(kx, (B, n_channels, T), jnp.float32)
    h_ncl = jax.random.normal(kh, (B, aux_channels, T), jnp.float32)
    x_btc = jnp.transpose(x_ncl, (0, 2, 1))
    h_btc = jnp.transpose(h_ncl, (0, 2, 1))

    # Two configs: a typical small dilation, and a dilation whose causal halo
    # spans more than one time tile (exercises the multi-tile carry path).
    configs = [
        dict(kernel_size=3, dilation=2),    # pad = 4  (< tile_t)
        dict(kernel_size=2, dilation=80),   # pad = 80 (> tile_t)
    ]

    for cfg in configs:
        params = make_params(kp, cfg["kernel_size"], n_channels,
                             aux_channels, skip_channels)

        out, skip = resblock_forward(
            x_btc, h_btc, params,
            kernel_size=cfg["kernel_size"], dilation=cfg["dilation"],
            tile_t=tile_t)
        out, skip = jax.block_until_ready((out, skip))

        ref_out, ref_skip = reference_forward(
            x_btc, h_btc, params,
            kernel_size=cfg["kernel_size"], dilation=cfg["dilation"])
        np.testing.assert_allclose(np.asarray(out), np.asarray(ref_out),
                                   rtol=1e-4, atol=1e-5)
        np.testing.assert_allclose(np.asarray(skip), np.asarray(ref_skip),
                                   rtol=1e-4, atol=1e-5)

    print("KERNEL_OK")
</pallas_src>

<mosaic_0001>
module attributes {stable_mosaic.version = 11 : i64} {
  func.func @resblock_kernel(%arg0: i32, %arg1: i32, %arg2: memref<1x64x32xf32, #tpu.memory_space<vmem>>, %arg3: memref<1x64x16xf32, #tpu.memory_space<vmem>>, %arg4: memref<112x64xf32, #tpu.memory_space<vmem>>, %arg5: memref<1x64xf32, #tpu.memory_space<vmem>>, %arg6: memref<32x32xf32, #tpu.memory_space<vmem>>, %arg7: memref<1x32xf32, #tpu.memory_space<vmem>>, %arg8: memref<32x32xf32, #tpu.memory_space<vmem>>, %arg9: memref<1x32xf32, #tpu.memory_space<vmem>>, %arg10: memref<1x64x64xf32, #tpu.memory_space<vmem>>, %arg11: memref<8x32xf32, #tpu.memory_space<vmem>>) attributes {dimension_semantics = [#tpu.dimension_semantics<parallel>, #tpu.dimension_semantics<arbitrary>], iteration_bounds = array<i64: 2, 4>, scalar_prefetch = 0 : i64, scratch_operands = 1 : i64, tpu.core_type = #tpu.core_type<tc>, window_params = [{transform_indices = @transform_0, window_bounds = array<i64: 1, 64, 32>}, {transform_indices = @transform_1, window_bounds = array<i64: 1, 64, 16>}, {pipeline_mode = #tpu.pipeline_mode<synchronous>, transform_indices = @transform_2, window_bounds = array<i64: 112, 64>}, {pipeline_mode = #tpu.pipeline_mode<synchronous>, transform_indices = @transform_3, window_bounds = array<i64: 1, 64>}, {pipeline_mode = #tpu.pipeline_mode<synchronous>, transform_indices = @transform_4, window_bounds = array<i64: 32, 32>}, {pipeline_mode = #tpu.pipeline_mode<synchronous>, transform_indices = @transform_5, window_bounds = array<i64: 1, 32>}, {pipeline_mode = #tpu.pipeline_mode<synchronous>, transform_indices = @transform_6, window_bounds = array<i64: 32, 32>}, {pipeline_mode = #tpu.pipeline_mode<synchronous>, transform_indices = @transform_7, window_bounds = array<i64: 1, 32>}, {transform_indices = @transform_8, window_bounds = array<i64: 1, 64, 64>}]} {
    %c0 = arith.constant 0 : index
    %c0_0 = arith.constant 0 : index
    %c0_1 = arith.constant 0 : index
    %0 = vector.load %arg2[%c0, %c0_0, %c0_1] : memref<1x64x32xf32, #tpu.memory_space<vmem>>, vector<1x64x32xf32>
    %1 = vector.shape_cast %0 : vector<1x64x32xf32> to vector<64x32xf32>
    %c0_i32 = arith.constant 0 : i32
    %2 = arith.cmpi eq, %arg1, %c0_i32 : i32
    %3 = arith.extui %2 : i1 to i32
    %c0_i32_2 = arith.constant 0 : i32
    %4 = arith.cmpi ne, %3, %c0_i32_2 : i32
    scf.if %4 {
      %cst_28 = arith.constant 0.000000e+00 : f32
      %44 = vector.broadcast %cst_28 : f32 to vector<8x32xf32>
      %c0_29 = arith.constant 0 : index
      %c0_30 = arith.constant 0 : index
      %45 = vector.load %arg11[%c0_29, %c0_30] : memref<8x32xf32, #tpu.memory_space<vmem>>, vector<8x32xf32>
      tpu.vector_store %arg11[%c0_29, %c0_30], %44 {strides = array<i32>} : memref<8x32xf32, #tpu.memory_space<vmem>>, vector<8x32xf32>,
    } else {
    }
    %c0_3 = arith.constant 0 : index
    %c0_4 = arith.constant 0 : index
    %5 = vector.load %arg11[%c0_3, %c0_4] : memref<8x32xf32, #tpu.memory_space<vmem>>, vector<8x32xf32>
    %6 = tpu.concatenate %5, %1 in 0 : vector<8x32xf32>, vector<64x32xf32> -> vector<72x32xf32>
    %7 = vector.extract_strided_slice %6 {offsets = [64, 0], sizes = [8, 32], strides = [1, 1]} : vector<72x32xf32> to vector<8x32xf32>
    %c0_5 = arith.constant 0 : index
    %c0_6 = arith.constant 0 : index
    %8 = vector.load %arg11[%c0_5, %c0_6] : memref<8x32xf32, #tpu.memory_space<vmem>>, vector<8x32xf32>
    tpu.vector_store %arg11[%c0_5, %c0_6], %7 {strides = array<i32>} : memref<8x32xf32, #tpu.memory_space<vmem>>, vector<8x32xf32>,
    %9 = vector.extract_strided_slice %6 {offsets = [4, 0], sizes = [64, 32], strides = [1, 1]} : vector<72x32xf32> to vector<64x32xf32>
    %10 = vector.extract_strided_slice %6 {offsets = [6, 0], sizes = [64, 32], strides = [1, 1]} : vector<72x32xf32> to vector<64x32xf32>
    %11 = vector.extract_strided_slice %6 {offsets = [8, 0], sizes = [64, 32], strides = [1, 1]} : vector<72x32xf32> to vector<64x32xf32>
    %c0_7 = arith.constant 0 : index
    %c0_8 = arith.constant 0 : index
    %c0_9 = arith.constant 0 : index
    %12 = vector.load %arg3[%c0_7, %c0_8, %c0_9] : memref<1x64x16xf32, #tpu.memory_space<vmem>>, vector<1x64x16xf32>
    %13 = vector.shape_cast %12 : vector<1x64x16xf32> to vector<64x16xf32>
    %14 = tpu.concatenate %9, %10, %11, %13 in 1 : vector<64x32xf32>, vector<64x32xf32>, vector<64x32xf32>, vector<64x16xf32> -> vector<64x112xf32>
    %c0_10 = arith.constant 0 : index
    %c0_11 = arith.constant 0 : index
    %15 = vector.load %arg4[%c0_10, %c0_11] : memref<112x64xf32, #tpu.memory_space<vmem>>, vector<112x64xf32>
    %cst = arith.constant dense<0.000000e+00> : vector<64x64xf32>
    %16 = tpu.matmul %14, %15, %cst {dimension_numbers = #tpu.dot_dimension_numbers<[1], [0], [0], [1], [0, 0, 1, 1], [], []>} : vector<64x112xf32>, vector<112x64xf32>, vector<64x64xf32> -> vector<64x64xf32>
    %c0_12 = arith.constant 0 : index
    %c0_13 = arith.constant 0 : index
    %17 = vector.load %arg5[%c0_12, %c0_13] : memref<1x64xf32, #tpu.memory_space<vmem>>, vector<1x64xf32>
    %18 = vector.broadcast %17 : vector<1x64xf32> to vector<64x64xf32>
    %19 = arith.addf %16, %18 : vector<64x64xf32>
    %20 = vector.extract_strided_slice %19 {offsets = [0, 0], sizes = [64, 32], strides = [1, 1]} : vector<64x64xf32> to vector<64x32xf32>
    %21 = math.tanh %20 : vector<64x32xf32>
    %22 = vector.extract_strided_slice %19 {offsets = [0, 32], sizes = [64, 32], strides = [1, 1]} : vector<64x64xf32> to vector<64x32xf32>
    %23 = arith.negf %22 : vector<64x32xf32>
    %24 = math.exp %23 : vector<64x32xf32>
    %cst_14 = arith.constant 1.000000e+00 : f32
    %25 = vector.broadcast %cst_14 : f32 to vector<64x32xf32>
    %26 = arith.addf %25, %24 : vector<64x32xf32>
    %27 = arith.divf %25, %26 : vector<64x32xf32>
    %28 = arith.mulf %21, %27 : vector<64x32xf32>
    %c0_15 = arith.constant 0 : index
    %c0_16 = arith.constant 0 : index
    %29 = vector.load %arg6[%c0_15, %c0_16] : memref<32x32xf32, #tpu.memory_space<vmem>>, vector<32x32xf32>
    %cst_17 = arith.constant dense<0.000000e+00> : vector<64x32xf32>
    %30 = tpu.matmul %28, %29, %cst_17 {dimension_numbers = #tpu.dot_dimension_numbers<[1], [0], [0], [1], [0, 0, 1, 1], [], []>} : vector<64x32xf32>, vector<32x32xf32>, vector<64x32xf32> -> vector<64x32xf32>
    %c0_18 = arith.constant 0 : index
    %c0_19 = arith.constant 0 : index
    %31 = vector.load %arg7[%c0_18, %c0_19] : memref<1x32xf32, #tpu.memory_space<vmem>>, vector<1x32xf32>
    %32 = vector.broadcast %31 : vector<1x32xf32> to vector<64x32xf32>
    %33 = arith.addf %30, %32 : vector<64x32xf32>
    %34 = arith.addf %33, %1 : vector<64x32xf32>
    %c0_20 = arith.constant 0 : index
    %c0_21 = arith.constant 0 : index
    %35 = vector.load %arg8[%c0_20, %c0_21] : memref<32x32xf32, #tpu.memory_space<vmem>>, vector<32x32xf32>
    %cst_22 = arith.constant dense<0.000000e+00> : vector<64x32xf32>
    %36 = tpu.matmul %34, %35, %cst_22 {dimension_numbers = #tpu.dot_dimension_numbers<[1], [0], [0], [1], [0, 0, 1, 1], [], []>} : vector<64x32xf32>, vector<32x32xf32>, vector<64x32xf32> -> vector<64x32xf32>
    %c0_23 = arith.constant 0 : index
    %c0_24 = arith.constant 0 : index
    %37 = vector.load %arg9[%c0_23, %c0_24] : memref<1x32xf32, #tpu.memory_space<vmem>>, vector<1x32xf32>
    %38 = vector.broadcast %37 : vector<1x32xf32> to vector<64x32xf32>
    %39 = arith.addf %36, %38 : vector<64x32xf32>
    %40 = tpu.concatenate %34, %39 in 1 : vector<64x32xf32>, vector<64x32xf32> -> vector<64x64xf32>
    %c0_25 = arith.constant 0 : index
    %c0_26 = arith.constant 0 : index
    %c0_27 = arith.constant 0 : index
    %41 = vector.load %arg10[%c0_25, %c0_26, %c0_27] : memref<1x64x64xf32, #tpu.memory_space<vmem>>, vector<1x64x64xf32>
    %42 = vector.shape_cast %41 : vector<1x64x64xf32> to vector<64x64xf32>
    %43 = vector.shape_cast %40 : vector<64x64xf32> to vector<1x64x64xf32>
    tpu.vector_store %arg10[%c0_25, %c0_26, %c0_27], %43 {strides = array<i32>} : memref<1x64x64xf32, #tpu.memory_space<vmem>>, vector<1x64x64xf32>,
    return
  }
  func.func @transform_0(%arg0: i32, %arg1: i32) -> (i32, i32, i32) {
    %c0_i32 = arith.constant 0 : i32
    %c0_i32_0 = arith.constant 0 : i32
    return %arg0, %arg1, %c0_i32 : i32, i32, i32
  }
  func.func @transform_1(%arg0: i32, %arg1: i32) -> (i32, i32, i32) {
    %c0_i32 = arith.constant 0 : i32
    %c0_i32_0 = arith.constant 0 : i32
    return %arg0, %arg1, %c0_i32 : i32, i32, i32
  }
  func.func @transform_2(%arg0: i32, %arg1: i32) -> (i32, i32) {
    %c0_i32 = arith.constant 0 : i32
    %c0_i32_0 = arith.constant 0 : i32
    %c0_i32_1 = arith.constant 0 : i32
    return %c0_i32, %c0_i32_0 : i32, i32
  }
  func.func @transform_3(%arg0: i32, %arg1: i32) -> (i32, i32) {
    %c0_i32 = arith.constant 0 : i32
    %c0_i32_0 = arith.constant 0 : i32
    %c0_i32_1 = arith.constant 0 : i32
    return %c0_i32, %c0_i32_0 : i32, i32
  }
  func.func @transform_4(%arg0: i32, %arg1: i32) -> (i32, i32) {
    %c0_i32 = arith.constant 0 : i32
    %c0_i32_0 = arith.constant 0 : i32
    %c0_i32_1 = arith.constant 0 : i32
    return %c0_i32, %c0_i32_0 : i32, i32
  }
  func.func @transform_5(%arg0: i32, %arg1: i32) -> (i32, i32) {
    %c0_i32 = arith.constant 0 : i32
    %c0_i32_0 = arith.constant 0 : i32
    %c0_i32_1 = arith.constant 0 : i32
    return %c0_i32, %c0_i32_0 : i32, i32
  }
  func.func @transform_6(%arg0: i32, %arg1: i32) -> (i32, i32) {
    %c0_i32 = arith.constant 0 : i32
    %c0_i32_0 = arith.constant 0 : i32
    %c0_i32_1 = arith.constant 0 : i32
    return %c0_i32, %c0_i32_0 : i32, i32
  }
  func.func @transform_7(%arg0: i32, %arg1: i32) -> (i32, i32) {
    %c0_i32 = arith.constant 0 : i32
    %c0_i32_0 = arith.constant 0 : i32
    %c0_i32_1 = arith.constant 0 : i32
    return %c0_i32, %c0_i32_0 : i32, i32
  }
  func.func @transform_8(%arg0: i32, %arg1: i32) -> (i32, i32, i32) {
    %c0_i32 = arith.constant 0 : i32
    %c0_i32_0 = arith.constant 0 : i32
    return %arg0, %arg1, %c0_i32 : i32, i32, i32
  }
}

</mosaic_0001>

<llo_original>
// kernel: tpu_custom_call.1
$region0: #{tpu_custom_call.1}
  #allocation0 [shape = 'u32[]', space=smem, size = 0x4, offset = 0x4, fixed_abs, tag = 'smem constant byte address 0x4 - core index']
  #allocation1 [shape = 'u32[144,128]{1,0:T(1,128)}', space=vmem, size = 0x12000, scoped, tag = 'internal scratch']
  #allocation2 [shape = 'f32[8,32]{1,0:T(8,128)}', space=vmem, size = 0x1000, scoped, tag = 'scratch operand']
  %s0 = inlined_call_operand.vmem [shape: f32[2,256,32], index: 0, kind: input, shape index: {}]
  %s1 = inlined_call_operand.vmem [shape: f32[2,256,16], index: 1, kind: input, shape index: {}]
  %s2 = inlined_call_operand.vmem [shape: f32[112,64], index: 2, kind: input, shape index: {}]
  %s3 = inlined_call_operand.vmem [shape: f32[1,64], index: 3, kind: input, shape index: {}]
  %s4 = inlined_call_operand.vmem [shape: f32[32,32], index: 4, kind: input, shape index: {}]
  %s5 = inlined_call_operand.vmem [shape: f32[1,32], index: 5, kind: input, shape index: {}]
  %s6 = inlined_call_operand.vmem [shape: f32[32,32], index: 6, kind: input, shape index: {}]
  %s7 = inlined_call_operand.vmem [shape: f32[1,32], index: 7, kind: input, shape index: {}]
  %s8 = inlined_call_operand.vmem [shape: f32[2,256,64], index: 8, kind: output, shape index: {}]
  %s9 = sld [smem:[#allocation0]]
  $region69: #{tpu_custom_call.1} parent=0
    _
  %s11 = ssub.s32 1, %s9
  %s12 = scalar_select 0, %s11, %s9
  loop: start=0, step=1, limit=10
  $region2: #{tpu_custom_call.1} parent=0 // loop_pre_header
    _
  $region3: #{tpu_custom_call.1} parent=0 // loop_header
    %s14 = sphi 0, %s18
    %p15 = scmp.ge.s32.totalorder %s14, 10
    %s21 = sphi 0, %s33
    %s22 = sphi 0, %s29
    %s23 = sphi 0, %s21
    %s24 = sphi 0, %s22
    %s25 = sphi 0, %s23
    %s26 = sphi 0, %s24
    %s38 = sphi 0, %s40
    %s41 = sphi 0, %s38
    %s42 = sphi 0, %s41
    %s58 = sphi 0, %s42
    %s66 = sphi 0, %s68
    %s69 = sphi 0, %s66
    %s70 = sphi 0, %s69
    %s86 = sphi 0, %s70
    %s90 = sphi 0, %s90
    %s92 = sphi 0, %s90
    %s93 = sphi 0, %s92
    %s107 = sphi 0, %s93
    %s111 = sphi 0, %s111
    %s113 = sphi 0, %s111
    %s114 = sphi 0, %s113
    %s128 = sphi 0, %s114
    %s132 = sphi 0, %s132
    %s134 = sphi 0, %s132
    %s135 = sphi 0, %s134
    %s149 = sphi 0, %s135
    %s153 = sphi 0, %s153
    %s155 = sphi 0, %s153
    %s156 = sphi 0, %s155
    %s170 = sphi 0, %s156
    %s174 = sphi 0, %s174
    %s176 = sphi 0, %s174
    %s177 = sphi 0, %s176
    %s191 = sphi 0, %s177
    %s195 = sphi 0, %s195
    %s197 = sphi 0, %s195
    %s198 = sphi 0, %s197
    %s212 = sphi 0, %s198
    %s220 = sphi 0, %s222
    %s223 = sphi 0, %s220
    %s224 = sphi 0, %s223
    %s240 = sphi 0, %s224
  $region4: #{tpu_custom_call.1} parent=0 // loop_header_branch
    %17 = sbr.rel (%p15) target = $region8
  $region5: #{tpu_custom_call.1} parent=0 // loop_body
    %s19 = ssub.s32 %s14, 1
    %s20 = ssub.s32 %s14, 2
    %s27 = sadd.s32 1, %s22
    %p28 = scmp.ge.s32.totalorder %s27, 4
    %s29 = scalar_select %p28, 0, %s27
    %s30 = sadd.s32 1, %s21
    %s31 = scalar_select %p28, %s30, %s21
    %p32 = scmp.ge.s32.totalorder %s31, 2
    %s33 = scalar_select %p32, 0, %s31
    %s34 = ssub.s32 %s21, %s33
    %s35 = ssub.s32 %s22, %s29
    %s36 = sor.u32 %s34, %s35
    %p37 = scmp.eq.s32.totalorder %s36, 0
    %s39 = sadd.s32 %s38, 1
    %s40 = scalar_select %p37, %s38, %s39
    %p43 = pneg %p37
    %p44 = scmp.eq.s32.totalorder %s14, 7
    %p45 = por %p43, %p44
    %p46 = scmp.ne.s32.totalorder %s38, %s41
    %p47 = scmp.eq.s32.totalorder %s14, 0
    %p48 = por %p46, %p47
    %p49 = scmp.ne.s32.totalorder %s38, %s41
    %p50 = scmp.eq.s32.totalorder %s19, 7
    %p51 = por %p49, %p50
    %p52 = scmp.ne.s32.totalorder %s41, %s42
    %p53 = scmp.eq.s32.totalorder %s19, 0
    %p54 = por %p52, %p53
    %p55 = scmp.ne.s32.totalorder %s41, %s42
    %p56 = scmp.eq.s32.totalorder %s20, 7
    %p57 = por %p55, %p56
    %p59 = scmp.ne.s32.totalorder %s42, %s58
    %p60 = scmp.eq.s32.totalorder %s20, 0
    %p61 = por %p59, %p60
    %s62 = ssub.s32 %s21, %s33
    %s63 = ssub.s32 %s22, %s29
    %s64 = sor.u32 %s62, %s63
    %p65 = scmp.eq.s32.totalorder %s64, 0
    %s67 = sadd.s32 %s66, 1
    %s68 = scalar_select %p65, %s66, %s67
    %p71 = pneg %p65
    %p72 = scmp.eq.s32.totalorder %s14, 7
    %p73 = por %p71, %p72
    %p74 = scmp.ne.s32.totalorder %s66, %s69
    %p75 = scmp.eq.s32.totalorder %s14, 0
    %p76 = por %p74, %p75
    %p77 = scmp.ne.s32.totalorder %s66, %s69
    %p78 = scmp.eq.s32.totalorder %s19, 7
    %p79 = por %p77, %p78
    %p80 = scmp.ne.s32.totalorder %s69, %s70
    %p81 = scmp.eq.s32.totalorder %s19, 0
    %p82 = por %p80, %p81
    %p83 = scmp.ne.s32.totalorder %s69, %s70
    %p84 = scmp.eq.s32.totalorder %s20, 7
    %p85 = por %p83, %p84
    %p87 = scmp.ne.s32.totalorder %s70, %s86
    %p88 = scmp.eq.s32.totalorder %s20, 0
    %p89 = por %p87, %p88
    %s91 = sadd.s32 %s90, 1
    %p94 = scmp.eq.s32.totalorder %s14, 7
    %p95 = scmp.ne.s32.totalorder %s90, %s92
    %p96 = scmp.eq.s32.totalorder %s14, 0
    %p97 = por %p95, %p96
    %p98 = scmp.ne.s32.totalorder %s90, %s92
    %p99 = scmp.eq.s32.totalorder %s19, 7
    %p100 = por %p98, %p99
    %p101 = scmp.ne.s32.totalorder %s92, %s93
    %p102 = scmp.eq.s32.totalorder %s19, 0
    %p103 = por %p101, %p102
    %p104 = scmp.ne.s32.totalorder %s92, %s93
    %p105 = scmp.eq.s32.totalorder %s20, 7
    %p106 = por %p104, %p105
    %p108 = scmp.ne.s32.totalorder %s93, %s107
    %p109 = scmp.eq.s32.totalorder %s20, 0
    %p110 = por %p108, %p109
    %s112 = sadd.s32 %s111, 1
    %p115 = scmp.eq.s32.totalorder %s14, 7
    %p116 = scmp.ne.s32.totalorder %s111, %s113
    %p117 = scmp.eq.s32.totalorder %s14, 0
    %p118 = por %p116, %p117
    %p119 = scmp.ne.s32.totalorder %s111, %s113
    %p120 = scmp.eq.s32.totalorder %s19, 7
    %p121 = por %p119, %p120
    %p122 = scmp.ne.s32.totalorder %s113, %s114
    %p123 = scmp.eq.s32.totalorder %s19, 0
    %p124 = por %p122, %p123
    %p125 = scmp.ne.s32.totalorder %s113, %s114
    %p126 = scmp.eq.s32.totalorder %s20, 7
    %p127 = por %p125, %p126
    %p129 = scmp.ne.s32.totalorder %s114, %s128
    %p130 = scmp.eq.s32.totalorder %s20, 0
    %p131 = por %p129, %p130
    %s133 = sadd.s32 %s132, 1
    %p136 = scmp.eq.s32.totalorder %s14, 7
    %p137 = scmp.ne.s32.totalorder %s132, %s134
    %p138 = scmp.eq.s32.totalorder %s14, 0
    %p139 = por %p137, %p138
    %p140 = scmp.ne.s32.totalorder %s132, %s134
    %p141 = scmp.eq.s32.totalorder %s19, 7
    %p142 = por %p140, %p141
    %p143 = scmp.ne.s32.totalorder %s134, %s135
    %p144 = scmp.eq.s32.totalorder %s19, 0
    %p145 = por %p143, %p144
    %p146 = scmp.ne.s32.totalorder %s134, %s135
    %p147 = scmp.eq.s32.totalorder %s20, 7
    %p148 = por %p146, %p147
    %p150 = scmp.ne.s32.totalorder %s135, %s149
    %p151 = scmp.eq.s32.totalorder %s20, 0
    %p152 = por %p150, %p151
    %s154 = sadd.s32 %s153, 1
    %p157 = scmp.eq.s32.totalorder %s14, 7
    %p158 = scmp.ne.s32.totalorder %s153, %s155
    %p159 = scmp.eq.s32.totalorder %s14, 0
    %p160 = por %p158, %p159
    %p161 = scmp.ne.s32.totalorder %s153, %s155
    %p162 = scmp.eq.s32.totalorder %s19, 7
    %p163 = por %p161, %p162
    %p164 = scmp.ne.s32.totalorder %s155, %s156
    %p165 = scmp.eq.s32.totalorder %s19, 0
    %p166 = por %p164, %p165
    %p167 = scmp.ne.s32.totalorder %s155, %s156
    %p168 = scmp.eq.s32.totalorder %s20, 7
    %p169 = por %p167, %p168
    %p171 = scmp.ne.s32.totalorder %s156, %s170
    %p172 = scmp.eq.s32.totalorder %s20, 0
    %p173 = por %p171, %p172
    %s175 = sadd.s32 %s174, 1
    %p178 = scmp.eq.s32.totalorder %s14, 7
    %p179 = scmp.ne.s32.totalorder %s174, %s176
    %p180 = scmp.eq.s32.totalorder %s14, 0
    %p181 = por %p179, %p180
    %p182 = scmp.ne.s32.totalorder %s174, %s176
    %p183 = scmp.eq.s32.totalorder %s19, 7
    %p184 = por %p182, %p183
    %p185 = scmp.ne.s32.totalorder %s176, %s177
    %p186 = scmp.eq.s32.totalorder %s19, 0
    %p187 = por %p185, %p186
    %p188 = scmp.ne.s32.totalorder %s176, %s177
    %p189 = scmp.eq.s32.totalorder %s20, 7
    %p190 = por %p188, %p189
    %p192 = scmp.ne.s32.totalorder %s177, %s191
    %p193 = scmp.eq.s32.totalorder %s20, 0
    %p194 = por %p192, %p193
    %s196 = sadd.s32 %s195, 1
    %p199 = scmp.eq.s32.totalorder %s14, 7
    %p200 = scmp.ne.s32.totalorder %s195, %s197
    %p201 = scmp.eq.s32.totalorder %s14, 0
    %p202 = por %p200, %p201
    %p203 = scmp.ne.s32.totalorder %s195, %s197
    %p204 = scmp.eq.s32.totalorder %s19, 7
    %p205 = por %p203, %p204
    %p206 = scmp.ne.s32.totalorder %s197, %s198
    %p207 = scmp.eq.s32.totalorder %s19, 0
    %p208 = por %p206, %p207
    %p209 = scmp.ne.s32.totalorder %s197, %s198
    %p210 = scmp.eq.s32.totalorder %s20, 7
    %p211 = por %p209, %p210
    %p213 = scmp.ne.s32.totalorder %s198, %s212
    %p214 = scmp.eq.s32.totalorder %s20, 0
    %p215 = por %p213, %p214
    %s216 = ssub.s32 %s21, %s33
    %s217 = ssub.s32 %s22, %s29
    %s218 = sor.u32 %s216, %s217
    %p219 = scmp.eq.s32.totalorder %s218, 0
    %s221 = sadd.s32 %s220, 1
    %s222 = scalar_select %p219, %s220, %s221
    %p225 = pneg %p219
    %p226 = scmp.eq.s32.totalorder %s14, 7
    %p227 = por %p225, %p226
    %p228 = scmp.ne.s32.totalorder %s220, %s223
    %p229 = scmp.eq.s32.totalorder %s14, 0
    %p230 = por %p228, %p229
    %p231 = scmp.ne.s32.totalorder %s220, %s223
    %p232 = scmp.eq.s32.totalorder %s19, 7
    %p233 = por %p231, %p232
    %p234 = scmp.ne.s32.totalorder %s223, %s224
    %p235 = scmp.eq.s32.totalorder %s19, 0
    %p236 = por %p234, %p235
    %p237 = scmp.ne.s32.totalorder %s223, %s224
    %p238 = scmp.eq.s32.totalorder %s20, 7
    %p239 = por %p237, %p238
    %p241 = scmp.ne.s32.totalorder %s224, %s240
    %p242 = scmp.eq.s32.totalorder %s20, 0
    %p243 = por %p241, %p242
    %p244 = scmp.le.s32.totalorder 1, %s14
    %p245 = scmp.lt.s32.totalorder %s14, 9
    %p246 = pnand %p244, %p245
    %p247 = pneg %p246
    // Predicated region
    $region9: #{tpu_custom_call.1} parent=5 // pred_check
      _
    $region10: #{tpu_custom_call.1} parent=5 // pred_check_branch
      %249 = sbr.rel (%p246) target = $region12
    $region11: #{tpu_custom_call.1} parent=5 // pred_region
      %s250 = ssub.s32 %s14, 1
      // Predicated region
      $region13: #{tpu_custom_call.1} parent=11 // pred_check
        %p251 = pneg %p103
      $region14: #{tpu_custom_call.1} parent=11 // pred_check_branch
        %253 = sbr.rel (%p251) target = $region16
      $region15: #{tpu_custom_call.1} parent=11 // pred_region
        _
      $region16: #{tpu_custom_call.1} parent=11 // pred_fallthru
        _
      // Predicated region
      $region17: #{tpu_custom_call.1} parent=11 // pred_check
        %p254 = pneg %p124
      $region18: #{tpu_custom_call.1} parent=11 // pred_check_branch
        %256 = sbr.rel (%p254) target = $region20
      $region19: #{tpu_custom_call.1} parent=11 // pred_region
        _
      $region20: #{tpu_custom_call.1} parent=11 // pred_fallthru
        _
      // Predicated region
      $region21: #{tpu_custom_call.1} parent=11 // pred_check
        %p257 = pneg %p145
      $region22: #{tpu_custom_call.1} parent=11 // pred_check_branch
        %259 = sbr.rel (%p257) target = $region24
      $region23: #{tpu_custom_call.1} parent=11 // pred_region
        _
      $region24: #{tpu_custom_call.1} parent=11 // pred_fallthru
        _
      // Predicated region
      $region25: #{tpu_custom_call.1} parent=11 // pred_check
        %p260 = pneg %p166
      $region26: #{tpu_custom_call.1} parent=11 // pred_check_branch
        %262 = sbr.rel (%p260) target = $region28
      $region27: #{tpu_custom_call.1} parent=11 // pred_region
        _
      $region28: #{tpu_custom_call.1} parent=11 // pred_fallthru
        _
      // Predicated region
      $region29: #{tpu_custom_call.1} parent=11 // pred_check
        %p263 = pneg %p187
      $region30: #{tpu_custom_call.1} parent=11 // pred_check_branch
        %265 = sbr.rel (%p263) target = $region32
      $region31: #{tpu_custom_call.1} parent=11 // pred_region
        _
      $region32: #{tpu_custom_call.1} parent=11 // pred_fallthru
        _
      // Predicated region
      $region33: #{tpu_custom_call.1} parent=11 // pred_check
        %p266 = pneg %p208
      $region34: #{tpu_custom_call.1} parent=11 // pred_check_branch
        %268 = sbr.rel (%p266) target = $region36
      $region35: #{tpu_custom_call.1} parent=11 // pred_region
        _
      $region36: #{tpu_custom_call.1} parent=11 // pred_fallthru
        _
    $region12: #{tpu_custom_call.1} parent=5 // pred_fallthru
      _
    %p269 = scmp.lt.s32.totalorder %s14, 8
    // Predicated region
    $region37: #{tpu_custom_call.1} parent=5 // pred_check
      %p270 = pneg %p269
    $region38: #{tpu_custom_call.1} parent=5 // pred_check_branch
      %272 = sbr.rel (%p270) target = $region40
    $region39: #{tpu_custom_call.1} parent=5 // pred_region
      // Predicated region
      $region41: #{tpu_custom_call.1} parent=39 // pred_check
        %p273 = pneg %p48
      $region42: #{tpu_custom_call.1} parent=39 // pred_check_branch
        %275 = sbr.rel (%p273) target = $region44
      $region43: #{tpu_custom_call.1} parent=39 // pred_region
        %s276 = smul.u32 8, %s22
        %p277 = scmp.lt.s32.totalorder %s21, 1
        %s278 = scalar_select %p277, %s21, 1
        %p279 = scmp.lt.s32.totalorder %s276, 31
        %s280 = scalar_select %p279, %s276, 31
        %s281 = smul.addr %s278, 32
        %s282 = sadd.s32 %s280, %s281
        %s283 = smul.addr %s282, 8
        %s284 = scalar_lea.vmem %s0, %s283
        %s285 = smul.u32 8, %s22
      $region44: #{tpu_custom_call.1} parent=39 // pred_fallthru
        _
      // Predicated region
      $region45: #{tpu_custom_call.1} parent=39 // pred_check
        %p286 = pneg %p76
      $region46: #{tpu_custom_call.1} parent=39 // pred_check_branch
        %288 = sbr.rel (%p286) target = $region48
      $region47: #{tpu_custom_call.1} parent=39 // pred_region
        %s289 = smul.u32 8, %s22
        %p290 = scmp.lt.s32.totalorder %s21, 1
        %s291 = scalar_select %p290, %s21, 1
        %p292 = scmp.lt.s32.totalorder %s289, 31
        %s293 = scalar_select %p292, %s289, 31
        %s294 = smul.addr %s291, 32
        %s295 = sadd.s32 %s293, %s294
        %s296 = smul.addr %s295, 8
        %s297 = scalar_lea.vmem %s1, %s296
        %s298 = smul.u32 8, %s22
      $region48: #{tpu_custom_call.1} parent=39 // pred_fallthru
        _
    $region40: #{tpu_custom_call.1} parent=5 // pred_fallthru
      _
    %p299 = scmp.le.s32.totalorder 1, %s14
    %p300 = scmp.lt.s32.totalorder %s14, 9
    %p301 = pnand %p299, %p300
    %p302 = pneg %p301
    // Predicated region
    $region49: #{tpu_custom_call.1} parent=5 // pred_check
      _
    $region50: #{tpu_custom_call.1} parent=5 // pred_check_branch
      %304 = sbr.rel (%p301) target = $region52
    $region51: #{tpu_custom_call.1} parent=5 // pred_region
      %s305 = ssub.s32 %s14, 1
      %s306 = smul.u32 8, %s24
      %p307 = scmp.lt.s32.totalorder %s23, 1
      %s308 = scalar_select %p307, %s23, 1
      %p309 = scmp.lt.s32.totalorder %s306, 31
      %s310 = scalar_select %p309, %s306, 31
      %s311 = smul.addr %s308, 32
      %s312 = sadd.s32 %s310, %s311
      %s313 = smul.addr %s312, 8
      %s314 = scalar_lea.vmem %s0, %s313
      %p315 = pneg %p54
      %p316 = pneg %p51
      %s317 = smul.u32 8, %s24
      %p318 = scmp.lt.s32.totalorder %s23, 1
      %s319 = scalar_select %p318, %s23, 1
      %p320 = scmp.lt.s32.totalorder %s317, 31
      %s321 = scalar_select %p320, %s317, 31
      %s322 = smul.addr %s319, 32
      %s323 = sadd.s32 %s321, %s322
      %s324 = smul.addr %s323, 8
      %s325 = scalar_lea.vmem %s1, %s324
      %p326 = pneg %p82
      %p327 = pneg %p79
      %p328 = pneg %p103
      %p329 = pneg %p100
      %p330 = pneg %p124
      %p331 = pneg %p121
      %p332 = pneg %p145
      %p333 = pneg %p142
      %p334 = pneg %p166
      %p335 = pneg %p163
      %p336 = pneg %p187
      %p337 = pneg %p184
      %p338 = pneg %p208
      %p339 = pneg %p205
      %p340 = pneg %p236
      %p341 = pneg %p233
      %s342 = smul.u32 8, %s24
      %p343 = scmp.lt.s32.totalorder %s23, 1
      %s344 = scalar_select %p343, %s23, 1
      %p345 = scmp.lt.s32.totalorder %s342, 31
      %s346 = scalar_select %p345, %s342, 31
      %s347 = smul.addr %s344, 32
      %s348 = sadd.s32 %s346, %s347
      %s349 = smul.addr %s348, 8
      %s350 = scalar_lea.vmem %s8, %s349
      %s351 = smul.u32 8, %s24
      %p352 = scmp.lt.s32.totalorder %s23, 1
      %s353 = scalar_select %p352, %s23, 1
      %p354 = scmp.lt.s32.totalorder %s351, 31
      %s355 = scalar_select %p354, %s351, 31
      %s356 = smul.addr %s353, 32
      %s357 = sadd.s32 %s355, %s356
      %s358 = smul.addr %s357, 8
      %s359 = scalar_lea.vmem %s0, %s358
      %s360 = smul.u32 8, %s24
      %s361 = smul.u32 8, %s24
      %p362 = scmp.lt.s32.totalorder %s23, 1
      %s363 = scalar_select %p362, %s23, 1
      %p364 = scmp.lt.s32.totalorder %s361, 31
      %s365 = scalar_select %p364, %s361, 31
      %s366 = smul.addr %s363, 32
      %s367 = sadd.s32 %s365, %s366
      %s368 = smul.addr %s367, 8
      %s369 = scalar_lea.vmem %s1, %s368
      %s370 = smul.u32 8, %s24
      %s371 = smul.u32 8, %s24
      %p372 = scmp.lt.s32.totalorder %s23, 1
      %s373 = scalar_select %p372, %s23, 1
      %p374 = scmp.lt.s32.totalorder %s371, 31
      %s375 = scalar_select %p374, %s371, 31
      %s376 = smul.addr %s373, 32
      %s377 = sadd.s32 %s375, %s376
      %s378 = smul.addr %s377, 8
      %s379 = scalar_lea.vmem %s8, %s378
      %s380 = smul.u32 8, %s24
      %v381 = vld [vmem:[%s359] sm:$0xff]
      %v382 = vld [vmem:[%s359 + $0x8] sm:$0xff]
      %v383 = vld [vmem:[%s359 + $0x10] sm:$0xff]
      %v384 = vld [vmem:[%s359 + $0x18] sm:$0xff]
      %v385 = vld [vmem:[%s359 + $0x20] sm:$0xff]
      %v386 = vld [vmem:[%s359 + $0x28] sm:$0xff]
      %v387 = vld [vmem:[%s359 + $0x30] sm:$0xff]
      %v388 = vld [vmem:[%s359 + $0x38] sm:$0xff]
      %p389 = scmp.eq.s32.totalorder %s24, 0
      // Predicated region
      $region53: #{tpu_custom_call.1} parent=51 // pred_check
        %p390 = pneg %p389
      $region54: #{tpu_custom_call.1} parent=51 // pred_check_branch
        %392 = sbr.rel (%p390) target = $region56
      $region55: #{tpu_custom_call.1} parent=51 // pred_region
        %vm393 = vcmask 261120
        %394 = vst.msk [vmem:[#allocation2] sm:$0xff] %vm393, 0.0
      $region56: #{tpu_custom_call.1} parent=51 // pred_fallthru
        _
      %v395 = vld [vmem:[#allocation2] sm:$0xff]
      %vm396 = vcmask 261120
      %397 = vst.msk [vmem:[#allocation2] sm:$0xff] %vm396, %v388
      %v398 = vld [vmem:[%s369] sm:$0xff]
      %v399 = vld [vmem:[%s369 + $0x8] sm:$0xff]
      %v400 = vld [vmem:[%s369 + $0x10] sm:$0xff]
      %v401 = vld [vmem:[%s369 + $0x18] sm:$0xff]
      %v402 = vld [vmem:[%s369 + $0x20] sm:$0xff]
      %v403 = vld [vmem:[%s369 + $0x28] sm:$0xff]
      %v404 = vld [vmem:[%s369 + $0x30] sm:$0xff]
      %v405 = vld [vmem:[%s369 + $0x38] sm:$0xff]
      %vm415 = vcmask 1045504
      %v416 = vrot.slane %v395, 2
      %v417 = vrot.slane %v381, 2
      %v418 = vsel %vm415, %v416, %v417
      %v419 = vrot.slane %v382, 2
      %v420 = vsel %vm415, %v417, %v419
      %v421 = vrot.slane %v383, 2
      %v422 = vsel %vm415, %v419, %v421
      %v423 = vrot.slane %v384, 2
      %v424 = vsel %vm415, %v421, %v423
      %v425 = vrot.slane %v385, 2
      %v426 = vsel %vm415, %v423, %v425
      %v427 = vrot.slane %v386, 2
      %v428 = vsel %vm415, %v425, %v427
      %v429 = vrot.slane %v387, 2
      %v430 = vsel %vm415, %v427, %v429
      %v431 = vrot.slane %v388, 2
      %v432 = vsel %vm415, %v429, %v431
      %433 = vrot.lane.b32.xlu0 %v418, 32
      %v434 = vpop.permute.xlu0 %433
      %435 = vrot.lane.b32.xlu0 %v420, 32
      %v436 = vpop.permute.xlu0 %435
      %437 = vrot.lane.b32.xlu0 %v422, 32
      %v438 = vpop.permute.xlu0 %437
      %439 = vrot.lane.b32.xlu0 %v424, 32
      %v440 = vpop.permute.xlu0 %439
      %441 = vrot.lane.b32.xlu0 %v426, 32
      %v442 = vpop.permute.xlu0 %441
      %443 = vrot.lane.b32.xlu0 %v428, 32
      %v444 = vpop.permute.xlu0 %443
      %445 = vrot.lane.b32.xlu0 %v430, 32
      %v446 = vpop.permute.xlu0 %445
      %447 = vrot.lane.b32.xlu0 %v432, 32
      %v448 = vpop.permute.xlu0 %447
      %449 = vrot.lane.b32.xlu0 %v431, 32
      %v450 = vpop.permute.xlu0 %449
      %vm460 = vcmask 1043456
      %v461 = vrot.slane %v381, 4
      %v462 = vrot.slane %v382, 4
      %v463 = vsel %vm460, %v461, %v462
      %v464 = vrot.slane %v383, 4
      %v465 = vsel %vm460, %v462, %v464
      %v466 = vrot.slane %v384, 4
      %v467 = vsel %vm460, %v464, %v466
      %v468 = vrot.slane %v385, 4
      %v469 = vsel %vm460, %v466, %v468
      %v470 = vrot.slane %v386, 4
      %v471 = vsel %vm460, %v468, %v470
      %v472 = vrot.slane %v387, 4
      %v473 = vsel %vm460, %v470, %v472
      %v474 = vrot.slane %v388, 4
      %v475 = vsel %vm460, %v472, %v474
      %476 = vrot.lane.b32.xlu0 %v461, 64
      %v477 = vpop.permute.xlu0 %476
      %478 = vrot.lane.b32.xlu0 %v463, 64
      %v479 = vpop.permute.xlu0 %478
      %480 = vrot.lane.b32.xlu0 %v465, 64
      %v481 = vpop.permute.xlu0 %480
      %482 = vrot.lane.b32.xlu0 %v467, 64
      %v483 = vpop.permute.xlu0 %482
      %484 = vrot.lane.b32.xlu0 %v469, 64
      %v485 = vpop.permute.xlu0 %484
      %486 = vrot.lane.b32.xlu0 %v471, 64
      %v487 = vpop.permute.xlu0 %486
      %488 = vrot.lane.b32.xlu0 %v473, 64
      %v489 = vpop.permute.xlu0 %488
      %490 = vrot.lane.b32.xlu0 %v475, 64
      %v491 = vpop.permute.xlu0 %490
      %492 = vrot.lane.b32.xlu0 %v474, 64
      %v493 = vpop.permute.xlu0 %492
      %v511 = vrot.slane %v398, 4
      %v512 = vrot.slane %v399, 4
      %v513 = vsel %vm460, %v511, %v512
      %v514 = vrot.slane %v400, 4
      %v515 = vsel %vm460, %v512, %v514
      %v516 = vrot.slane %v401, 4
      %v517 = vsel %vm460, %v514, %v516
      %v518 = vrot.slane %v402, 4
      %v519 = vsel %vm460, %v516, %v518
      %v520 = vrot.slane %v403, 4
      %v521 = vsel %vm460, %v518, %v520
      %v522 = vrot.slane %v404, 4
      %v523 = vsel %vm460, %v520, %v522
      %v524 = vrot.slane %v405, 4
      %v525 = vsel %vm460, %v522, %v524
      %526 = vrot.lane.b32.xlu0 %v511, 96
      %v527 = vpop.permute.xlu0 %526
      %528 = vrot.lane.b32.xlu0 %v513, 96
      %v529 = vpop.permute.xlu0 %528
      %530 = vrot.lane.b32.xlu0 %v515, 96
      %v531 = vpop.permute.xlu0 %530
      %532 = vrot.lane.b32.xlu0 %v517, 96
      %v533 = vpop.permute.xlu0 %532
      %534 = vrot.lane.b32.xlu0 %v519, 96
      %v535 = vpop.permute.xlu0 %534
      %536 = vrot.lane.b32.xlu0 %v521, 96
      %v537 = vpop.permute.xlu0 %536
      %538 = vrot.lane.b32.xlu0 %v523, 96
      %v539 = vpop.permute.xlu0 %538
      %540 = vrot.lane.b32.xlu0 %v525, 96
      %v541 = vpop.permute.xlu0 %540
      %542 = vrot.lane.b32.xlu0 %v524, 96
      %v543 = vpop.permute.xlu0 %542
      %v553 = vsel %vm396, %v395, %v434
      %v554 = vsel %vm396, %v381, %v436
      %v555 = vsel %vm396, %v382, %v438
      %v556 = vsel %vm396, %v383, %v440
      %v557 = vsel %vm396, %v384, %v442
      %v558 = vsel %vm396, %v385, %v444
      %v559 = vsel %vm396, %v386, %v446
      %v560 = vsel %vm396, %v387, %v448
      %v561 = vsel %vm396, %v388, %v450
      %vm562 = vcmask 523264
      %v563 = vsel %vm562, %v553, %v477
      %v564 = vsel %vm562, %v554, %v479
      %v565 = vsel %vm562, %v555, %v481
      %v566 = vsel %vm562, %v556, %v483
      %v567 = vsel %vm562, %v557, %v485
      %v568 = vsel %vm562, %v558, %v487
      %v569 = vsel %vm562, %v559, %v489
      %v570 = vsel %vm562, %v560, %v491
      %v571 = vsel %vm562, %v561, %v493
      %vm572 = vcmask 785408
      %v573 = vsel %vm572, %v563, %v527
      %v574 = vsel %vm572, %v564, %v529
      %v575 = vsel %vm572, %v565, %v531
      %v576 = vsel %vm572, %v566, %v533
      %v577 = vsel %vm572, %v567, %v535
      %v578 = vsel %vm572, %v568, %v537
      %v579 = vsel %vm572, %v569, %v539
      %v580 = vsel %vm572, %v570, %v541
      %v581 = vsel %vm572, %v571, %v543
      %v582 = vld [vmem:[%s2] sm:$0xff]
      %v583 = vld [vmem:[%s2 + $0x8] sm:$0xff]
      %v584 = vld [vmem:[%s2 + $0x10] sm:$0xff]
      %v585 = vld [vmem:[%s2 + $0x18] sm:$0xff]
      %v586 = vld [vmem:[%s2 + $0x20] sm:$0xff]
      %v587 = vld [vmem:[%s2 + $0x28] sm:$0xff]
      %v588 = vld [vmem:[%s2 + $0x30] sm:$0xff]
      %v589 = vld [vmem:[%s2 + $0x38] sm:$0xff]
      %v590 = vld [vmem:[%s2 + $0x40] sm:$0xff]
      %v591 = vld [vmem:[%s2 + $0x48] sm:$0xff]
      %v592 = vld [vmem:[%s2 + $0x50] sm:$0xff]
      %v593 = vld [vmem:[%s2 + $0x58] sm:$0xff]
      %v594 = vld [vmem:[%s2 + $0x60] sm:$0xff]
      %v595 = vld [vmem:[%s2 + $0x68] sm:$0xff]
      %v596 = vld [vmem:[%s3] sm:$0x1]
      %v598 = vlaneseq
      %v599 = vshrl.u32 %v598, 7
      %v600 = vsub.s32 0, %v599
      %v601 = vrot.slane %v596, %v600
      %v612 = vrot.slane %v573, 4
      %v613 = vrot.slane %v574, 4
      %v614 = vsel %vm460, %v612, %v613
      %v615 = vrot.slane %v575, 4
      %v616 = vsel %vm460, %v613, %v615
      %v617 = vrot.slane %v576, 4
      %v618 = vsel %vm460, %v615, %v617
      %v619 = vrot.slane %v577, 4
      %v620 = vsel %vm460, %v617, %v619
      %v621 = vrot.slane %v578, 4
      %v622 = vsel %vm460, %v619, %v621
      %v623 = vrot.slane %v579, 4
      %v624 = vsel %vm460, %v621, %v623
      %v625 = vrot.slane %v580, 4
      %v626 = vsel %vm460, %v623, %v625
      %v627 = vrot.slane %v581, 4
      %v628 = vsel %vm460, %v625, %v627
      %vm629 = vcmask 916480
      %v630 = vsel %vm629, %v614, 0
      %v632 = vsel %vm629, %v616, 0
      %v634 = vsel %vm629, %v618, 0
      %v636 = vsel %vm629, %v620, 0
      %v638 = vsel %vm629, %v622, 0
      %v640 = vsel %vm629, %v624, 0
      %v642 = vsel %vm629, %v626, 0
      %v644 = vsel %vm629, %v628, 0
      %646 = vmatprep.subr.mxu0 0.0
      %647 = vmatpush1.msra.mxu0 %v582
      %648 = vmatprep.subr.mxu0 0.0
      %649 = vmatpush1.msra.mxu0 %v583
      %650 = vmatprep.subr.mxu0 0.0
      %651 = vmatpush1.msra.mxu0 %v584
      %652 = vmatprep.subr.mxu0 0.0
      %653 = vmatpush1.msra.mxu0 %v585
      %654 = vmatprep.subr.mxu0 0.0
      %655 = vmatpush1.msra.mxu0 %v586
      %656 = vmatprep.subr.mxu0 0.0
      %657 = vmatpush1.msra.mxu0 %v587
      %658 = vmatprep.subr.mxu0 0.0
      %659 = vmatpush1.msra.mxu0 %v588
      %660 = vmatprep.subr.mxu0 0.0
      %661 = vmatpush1.msra.mxu0 %v589
      %662 = vmatprep.subr.mxu0 0.0
      %663 = vmatpush1.msra.mxu0 %v590
      %664 = vmatprep.subr.mxu0 0.0
      %665 = vmatpush1.msra.mxu0 %v591
      %666 = vmatprep.subr.mxu0 0.0
      %667 = vmatpush1.msra.mxu0 %v592
      %668 = vmatprep.subr.mxu0 0.0
      %669 = vmatpush1.msra.mxu0 %v593
      %670 = vmatprep.subr.mxu0 0.0
      %671 = vmatpush1.msra.mxu0 %v594
      %672 = vmatprep.subr.mxu0 0.0
      %673 = vmatpush1.msra.mxu0 %v595
      %674 = vmatprep.subr.mxu0 0.0
      %675 = vmatpush1.msra.mxu0 0.0
      %676 = vmatprep.subr.mxu0 0.0
      %677 = vmatpush1.msra.mxu0 0.0
      %678 = vmatprep.subr.mxu0 0.0
      %679 = vmatpush1.msra.mxu0 0.0
      %680 = vmatprep.subr.mxu0 0.0
      %681 = vmatpush1.msra.mxu0 0.0
      %682 = vmatprep.subr.mxu0 0.0
      %683 = vmatpush1.msra.mxu0 0.0
      %684 = vmatprep.subr.mxu0 0.0
      %685 = vmatpush1.msra.mxu0 0.0
      %686 = vmatprep.subr.mxu0 0.0
      %687 = vmatpush1.msra.mxu0 0.0
      %688 = vmatprep.subr.mxu0 0.0
      %689 = vmatpush1.msra.mxu0 0.0
      %690 = vmatprep.subr.mxu0 0.0
      %691 = vmatpush1.msra.mxu0 0.0
      %692 = vmatprep.subr.mxu0 0.0
      %693 = vmatpush1.msra.mxu0 0.0
      %694 = vmatprep.subr.mxu0 0.0
      %695 = vmatpush1.msra.mxu0 0.0
      %696 = vmatprep.subr.mxu0 0.0
      %697 = vmatpush1.msra.mxu0 0.0
      %698 = vmatprep.subr.mxu0 0.0
      %699 = vmatpush1.msra.mxu0 0.0
      %700 = vmatprep.subr.mxu0 0.0
      %701 = vmatpush1.msra.mxu0 0.0
      %702 = vmatprep.subr.mxu0 0.0
      %703 = vmatpush1.msra.mxu0 0.0
      %704 = vmatprep.subr.mxu0 0.0
      %705 = vmatpush1.msra.mxu0 0.0
      %706 = vmatprep.subr.mxu0 0.0
      %707 = vmatpush1.msra.mxu0 0.0
      %708 = vmatprep.subr.mxu0 0.0
      %709 = vmatpush1.msra.mxu0 0.0
      %710 = vmatprep.mubr.f32.mxu0 0.0
      %711 = vmatmul.mubr.f32.gmra.mrb[0].mxu0 %v630
      %v712 = vpop.f32.mrb[0].mxu0
      %v713 = vadd.f32 %v601, %v712
      %v714 = vpop.f32.mrb[0].mxu0
      %715 = vmatprep.mubr.f32.mxu0 0.0
      %716 = vmatmul.mubr.f32.gmra.mrb[0].mxu0 %v632
      %v717 = vpop.f32.mrb[0].mxu0
      %v718 = vadd.f32 %v601, %v717
      %v719 = vpop.f32.mrb[0].mxu0
      %720 = vmatprep.mubr.f32.mxu0 0.0
      %721 = vmatmul.mubr.f32.gmra.mrb[0].mxu0 %v634
      %v722 = vpop.f32.mrb[0].mxu0
      %v723 = vadd.f32 %v601, %v722
      %v724 = vpop.f32.mrb[0].mxu0
      %725 = vmatprep.mubr.f32.mxu0 0.0
      %726 = vmatmul.mubr.f32.gmra.mrb[0].mxu0 %v636
      %v727 = vpop.f32.mrb[0].mxu0
      %v728 = vadd.f32 %v601, %v727
      %v729 = vpop.f32.mrb[0].mxu0
      %730 = vmatprep.mubr.f32.mxu0 0.0
      %731 = vmatmul.mubr.f32.gmra.mrb[0].mxu0 %v638
      %v732 = vpop.f32.mrb[0].mxu0
      %v733 = vadd.f32 %v601, %v732
      %v734 = vpop.f32.mrb[0].mxu0
      %735 = vmatprep.mubr.f32.mxu0 0.0
      %736 = vmatmul.mubr.f32.gmra.mrb[0].mxu0 %v640
      %v737 = vpop.f32.mrb[0].mxu0
      %v738 = vadd.f32 %v601, %v737
      %v739 = vpop.f32.mrb[0].mxu0
      %740 = vmatprep.mubr.f32.mxu0 0.0
      %741 = vmatmul.mubr.f32.gmra.mrb[0].mxu0 %v642
      %v742 = vpop.f32.mrb[0].mxu0
      %v743 = vadd.f32 %v601, %v742
      %v744 = vpop.f32.mrb[0].mxu0
      %745 = vmatprep.mubr.f32.mxu0 0.0
      %746 = vmatmul.mubr.f32.gmra.mrb[0].mxu0 %v644
      %v747 = vpop.f32.mrb[0].mxu0
      %v748 = vadd.f32 %v601, %v747
      %v749 = vpop.f32.mrb[0].mxu0
      %750 = vdwg.mxu0
      %v751 = vtanh.pop %v713
      %v752 = vtanh.pop %v718
      %v753 = vtanh.pop %v723
      %v754 = vtanh.pop %v728
      %v755 = vtanh.pop %v733
      %v756 = vtanh.pop %v738
      %v757 = vtanh.pop %v743
      %v758 = vtanh.pop %v748
      %v759 = vxor.u32 %v713, 2147483648
      %v760 = vxor.u32 %v718, 2147483648
      %v761 = vxor.u32 %v723, 2147483648
      %v762 = vxor.u32 %v728, 2147483648
      %v763 = vxor.u32 %v733, 2147483648
      %v764 = vxor.u32 %v738, 2147483648
      %v765 = vxor.u32 %v743, 2147483648
      %v766 = vxor.u32 %v748, 2147483648
      %v767 = vmul.f32 %v759, 1.442695
      %v768 = vpow.pop %v767
      %v769 = vmul.f32 %v760, 1.442695
      %v770 = vpow.pop %v769
      %v771 = vmul.f32 %v761, 1.442695
      %v772 = vpow.pop %v771
      %v773 = vmul.f32 %v762, 1.442695
      %v774 = vpow.pop %v773
      %v775 = vmul.f32 %v763, 1.442695
      %v776 = vpow.pop %v775
      %v777 = vmul.f32 %v764, 1.442695
      %v778 = vpow.pop %v777
      %v779 = vmul.f32 %v765, 1.442695
      %v780 = vpow.pop %v779
      %v781 = vmul.f32 %v766, 1.442695
      %v782 = vpow.pop %v781
      %v783 = vadd.f32 %v768, 1.0
      %v784 = vadd.f32 %v770, 1.0
      %v785 = vadd.f32 %v772, 1.0
      %v786 = vadd.f32 %v774, 1.0
      %v787 = vadd.f32 %v776, 1.0
      %v788 = vadd.f32 %v778, 1.0
      %v789 = vadd.f32 %v780, 1.0
      %v790 = vadd.f32 %v782, 1.0
      %v791 = vrcp.pop %v783
      %v792 = vmul.f32 1.0, %v791
      %v793 = vrcp.pop %v784
      %v794 = vmul.f32 1.0, %v793
      %v795 = vrcp.pop %v785
      %v796 = vmul.f32 1.0, %v795
      %v797 = vrcp.pop %v786
      %v798 = vmul.f32 1.0, %v797
      %v799 = vrcp.pop %v787
      %v800 = vmul.f32 1.0, %v799
      %v801 = vrcp.pop %v788
      %v802 = vmul.f32 1.0, %v801
      %v803 = vrcp.pop %v789
      %v804 = vmul.f32 1.0, %v803
      %v805 = vrcp.pop %v790
      %v806 = vmul.f32 1.0, %v805
      %815 = vrot.lane.b32.xlu0 %v792, 96
      %v816 = vpop.permute.xlu0 %815
      %817 = vrot.lane.b32.xlu0 %v794, 96
      %v818 = vpop.permute.xlu0 %817
      %819 = vrot.lane.b32.xlu0 %v796, 96
      %v820 = vpop.permute.xlu0 %819
      %821 = vrot.lane.b32.xlu0 %v798, 96
      %v822 = vpop.permute.xlu0 %821
      %823 = vrot.lane.b32.xlu0 %v800, 96
      %v824 = vpop.permute.xlu0 %823
      %825 = vrot.lane.b32.xlu0 %v802, 96
      %v826 = vpop.permute.xlu0 %825
      %827 = vrot.lane.b32.xlu0 %v804, 96
      %v828 = vpop.permute.xlu0 %827
      %829 = vrot.lane.b32.xlu0 %v806, 96
      %v830 = vpop.permute.xlu0 %829
      %v839 = vmul.f32 %v751, %v816
      %v840 = vmul.f32 %v752, %v818
      %v841 = vmul.f32 %v753, %v820
      %v842 = vmul.f32 %v754, %v822
      %v843 = vmul.f32 %v755, %v824
      %v844 = vmul.f32 %v756, %v826
      %v845 = vmul.f32 %v757, %v828
      %v846 = vmul.f32 %v758, %v830
      %v847 = vld [vmem:[%s4] sm:$0xff]
      %v848 = vld [vmem:[%s4 + $0x8] sm:$0xff]
      %v849 = vld [vmem:[%s4 + $0x10] sm:$0xff]
      %v850 = vld [vmem:[%s4 + $0x18] sm:$0xff]
      %v851 = vld [vmem:[%s5] sm:$0x1]
      %v853 = vlaneseq
      %v854 = vshrl.u32 %v853, 7
      %v855 = vsub.s32 0, %v854
      %v856 = vrot.slane %v851, %v855
      %v859 = vsel %vm396, %v839, 0
      %v862 = vsel %vm396, %v840, 0
      %v865 = vsel %vm396, %v841, 0
      %v868 = vsel %vm396, %v842, 0
      %v871 = vsel %vm396, %v843, 0
      %v874 = vsel %vm396, %v844, 0
      %v877 = vsel %vm396, %v845, 0
      %v880 = vsel %vm396, %v846, 0
      %882 = vmatprep.subr.mxu0 0.0
      %883 = vmatpush1.msra.mxu0 %v847
      %884 = vmatprep.subr.mxu0 0.0
      %885 = vmatpush1.msra.mxu0 %v848
      %886 = vmatprep.subr.mxu0 0.0
      %887 = vmatpush1.msra.mxu0 %v849
      %888 = vmatprep.subr.mxu0 0.0
      %889 = vmatpush1.msra.mxu0 %v850
      %890 = vmatprep.subr.mxu0 0.0
      %891 = vmatpush1.msra.mxu0 0.0
      %892 = vmatprep.subr.mxu0 0.0
      %893 = vmatpush1.msra.mxu0 0.0
      %894 = vmatprep.subr.mxu0 0.0
      %895 = vmatpush1.msra.mxu0 0.0
      %896 = vmatprep.subr.mxu0 0.0
      %897 = vmatpush1.msra.mxu0 0.0
      %898 = vmatprep.subr.mxu0 0.0
      %899 = vmatpush1.msra.mxu0 0.0
      %900 = vmatprep.subr.mxu0 0.0
      %901 = vmatpush1.msra.mxu0 0.0
      %902 = vmatprep.subr.mxu0 0.0
      %903 = vmatpush1.msra.mxu0 0.0
      %904 = vmatprep.subr.mxu0 0.0
      %905 = vmatpush1.msra.mxu0 0.0
      %906 = vmatprep.subr.mxu0 0.0
      %907 = vmatpush1.msra.mxu0 0.0
      %908 = vmatprep.subr.mxu0 0.0
      %909 = vmatpush1.msra.mxu0 0.0
      %910 = vmatprep.subr.mxu0 0.0
      %911 = vmatpush1.msra.mxu0 0.0
      %912 = vmatprep.subr.mxu0 0.0
      %913 = vmatpush1.msra.mxu0 0.0
      %914 = vmatprep.subr.mxu0 0.0
      %915 = vmatpush1.msra.mxu0 0.0
      %916 = vmatprep.subr.mxu0 0.0
      %917 = vmatpush1.msra.mxu0 0.0
      %918 = vmatprep.subr.mxu0 0.0
      %919 = vmatpush1.msra.mxu0 0.0
      %920 = vmatprep.subr.mxu0 0.0
      %921 = vmatpush1.msra.mxu0 0.0
      %922 = vmatprep.subr.mxu0 0.0
      %923 = vmatpush1.msra.mxu0 0.0
      %924 = vmatprep.subr.mxu0 0.0
      %925 = vmatpush1.msra.mxu0 0.0
      %926 = vmatprep.subr.mxu0 0.0
      %927 = vmatpush1.msra.mxu0 0.0
      %928 = vmatprep.subr.mxu0 0.0
      %929 = vmatpush1.msra.mxu0 0.0
      %930 = vmatprep.subr.mxu0 0.0
      %931 = vmatpush1.msra.mxu0 0.0
      %932 = vmatprep.subr.mxu0 0.0
      %933 = vmatpush1.msra.mxu0 0.0
      %934 = vmatprep.subr.mxu0 0.0
      %935 = vmatpush1.msra.mxu0 0.0
      %936 = vmatprep.subr.mxu0 0.0
      %937 = vmatpush1.msra.mxu0 0.0
      %938 = vmatprep.subr.mxu0 0.0
      %939 = vmatpush1.msra.mxu0 0.0
      %940 = vmatprep.subr.mxu0 0.0
      %941 = vmatpush1.msra.mxu0 0.0
      %942 = vmatprep.subr.mxu0 0.0
      %943 = vmatpush1.msra.mxu0 0.0
      %944 = vmatprep.subr.mxu0 0.0
      %945 = vmatpush1.msra.mxu0 0.0
      %946 = vmatprep.mubr.f32.mxu0 0.0
      %947 = vmatmul.mubr.f32.gmra.mrb[0].mxu0 %v859
      %v948 = vpop.f32.mrb[0].mxu0
      %v949 = vadd.f32 %v856, %v948
      %v950 = vpop.f32.mrb[0].mxu0
      %951 = vmatprep.mubr.f32.mxu0 0.0
      %952 = vmatmul.mubr.f32.gmra.mrb[0].mxu0 %v862
      %v953 = vpop.f32.mrb[0].mxu0
      %v954 = vadd.f32 %v856, %v953
      %v955 = vpop.f32.mrb[0].mxu0
      %956 = vmatprep.mubr.f32.mxu0 0.0
      %957 = vmatmul.mubr.f32.gmra.mrb[0].mxu0 %v865
      %v958 = vpop.f32.mrb[0].mxu0
      %v959 = vadd.f32 %v856, %v958
      %v960 = vpop.f32.mrb[0].mxu0
      %961 = vmatprep.mubr.f32.mxu0 0.0
      %962 = vmatmul.mubr.f32.gmra.mrb[0].mxu0 %v868
      %v963 = vpop.f32.mrb[0].mxu0
      %v964 = vadd.f32 %v856, %v963
      %v965 = vpop.f32.mrb[0].mxu0
      %966 = vmatprep.mubr.f32.mxu0 0.0
      %967 = vmatmul.mubr.f32.gmra.mrb[0].mxu0 %v871
      %v968 = vpop.f32.mrb[0].mxu0
      %v969 = vadd.f32 %v856, %v968
      %v970 = vpop.f32.mrb[0].mxu0
      %971 = vmatprep.mubr.f32.mxu0 0.0
      %972 = vmatmul.mubr.f32.gmra.mrb[0].mxu0 %v874
      %v973 = vpop.f32.mrb[0].mxu0
      %v974 = vadd.f32 %v856, %v973
      %v975 = vpop.f32.mrb[0].mxu0
      %976 = vmatprep.mubr.f32.mxu0 0.0
      %977 = vmatmul.mubr.f32.gmra.mrb[0].mxu0 %v877
      %v978 = vpop.f32.mrb[0].mxu0
      %v979 = vadd.f32 %v856, %v978
      %v980 = vpop.f32.mrb[0].mxu0
      %981 = vmatprep.mubr.f32.mxu0 0.0
      %982 = vmatmul.mubr.f32.gmra.mrb[0].mxu0 %v880
      %v983 = vpop.f32.mrb[0].mxu0
      %v984 = vadd.f32 %v856, %v983
      %v985 = vpop.f32.mrb[0].mxu0
      %986 = vdwg.mxu0
      %v987 = vadd.f32 %v949, %v381
      %v988 = vadd.f32 %v954, %v382
      %v989 = vadd.f32 %v959, %v383
      %v990 = vadd.f32 %v964, %v384
      %v991 = vadd.f32 %v969, %v385
      %v992 = vadd.f32 %v974, %v386
      %v993 = vadd.f32 %v979, %v387
      %v994 = vadd.f32 %v984, %v388
      %v995 = vld [vmem:[%s6] sm:$0xff]
      %v996 = vld [vmem:[%s6 + $0x8] sm:$0xff]
      %v997 = vld [vmem:[%s6 + $0x10] sm:$0xff]
      %v998 = vld [vmem:[%s6 + $0x18] sm:$0xff]
      %v999 = vld [vmem:[%s7] sm:$0x1]
      %v1001 = vlaneseq
      %v1002 = vshrl.u32 %v1001, 7
      %v1003 = vsub.s32 0, %v1002
      %v1004 = vrot.slane %v999, %v1003
      %v1007 = vsel %vm396, %v987, 0
      %v1010 = vsel %vm396, %v988, 0
      %v1013 = vsel %vm396, %v989, 0
      %v1016 = vsel %vm396, %v990, 0
      %v1019 = vsel %vm396, %v991, 0
      %v1022 = vsel %vm396, %v992, 0
      %v1025 = vsel %vm396, %v993, 0
      %v1028 = vsel %vm396, %v994, 0
      %1030 = vmatprep.subr.mxu0 0.0
      %1031 = vmatpush1.msra.mxu0 %v995
      %1032 = vmatprep.subr.mxu0 0.0
      %1033 = vmatpush1.msra.mxu0 %v996
      %1034 = vmatprep.subr.mxu0 0.0
      %1035 = vmatpush1.msra.mxu0 %v997
      %1036 = vmatprep.subr.mxu0 0.0
      %1037 = vmatpush1.msra.mxu0 %v998
      %1038 = vmatprep.subr.mxu0 0.0
      %1039 = vmatpush1.msra.mxu0 0.0
      %1040 = vmatprep.subr.mxu0 0.0
      %1041 = vmatpush1.msra.mxu0 0.0
      %1042 = vmatprep.subr.mxu0 0.0
      %1043 = vmatpush1.msra.mxu0 0.0
      %1044 = vmatprep.subr.mxu0 0.0
      %1045 = vmatpush1.msra.mxu0 0.0
      %1046 = vmatprep.subr.mxu0 0.0
      %1047 = vmatpush1.msra.mxu0 0.0
      %1048 = vmatprep.subr.mxu0 0.0
      %1049 = vmatpush1.msra.mxu0 0.0
      %1050 = vmatprep.subr.mxu0 0.0
      %1051 = vmatpush1.msra.mxu0 0.0
      %1052 = vmatprep.subr.mxu0 0.0
      %1053 = vmatpush1.msra.mxu0 0.0
      %1054 = vmatprep.subr.mxu0 0.0
      %1055 = vmatpush1.msra.mxu0 0.0
      %1056 = vmatprep.subr.mxu0 0.0
      %1057 = vmatpush1.msra.mxu0 0.0
      %1058 = vmatprep.subr.mxu0 0.0
      %1059 = vmatpush1.msra.mxu0 0.0
      %1060 = vmatprep.subr.mxu0 0.0
      %1061 = vmatpush1.msra.mxu0 0.0
      %1062 = vmatprep.subr.mxu0 0.0
      %1063 = vmatpush1.msra.mxu0 0.0
      %1064 = vmatprep.subr.mxu0 0.0
      %1065 = vmatpush1.msra.mxu0 0.0
      %1066 = vmatprep.subr.mxu0 0.0
      %1067 = vmatpush1.msra.mxu0 0.0
      %1068 = vmatprep.subr.mxu0 0.0
      %1069 = vmatpush1.msra.mxu0 0.0
      %1070 = vmatprep.subr.mxu0 0.0
      %1071 = vmatpush1.msra.mxu0 0.0
      %1072 = vmatprep.subr.mxu0 0.0
      %1073 = vmatpush1.msra.mxu0 0.0
      %1074 = vmatprep.subr.mxu0 0.0
      %1075 = vmatpush1.msra.mxu0 0.0
      %1076 = vmatprep.subr.mxu0 0.0
      %1077 = vmatpush1.msra.mxu0 0.0
      %1078 = vmatprep.subr.mxu0 0.0
      %1079 = vmatpush1.msra.mxu0 0.0
      %1080 = vmatprep.subr.mxu0 0.0
      %1081 = vmatpush1.msra.mxu0 0.0
      %1082 = vmatprep.subr.mxu0 0.0
      %1083 = vmatpush1.msra.mxu0 0.0
      %1084 = vmatprep.subr.mxu0 0.0
      %1085 = vmatpush1.msra.mxu0 0.0
      %1086 = vmatprep.subr.mxu0 0.0
      %1087 = vmatpush1.msra.mxu0 0.0
      %1088 = vmatprep.subr.mxu0 0.0
      %1089 = vmatpush1.msra.mxu0 0.0
      %1090 = vmatprep.subr.mxu0 0.0
      %1091 = vmatpush1.msra.mxu0 0.0
      %1092 = vmatprep.subr.mxu0 0.0
      %1093 = vmatpush1.msra.mxu0 0.0
      %1094 = vmatprep.mubr.f32.mxu0 0.0
      %1095 = vmatmul.mubr.f32.gmra.mrb[0].mxu0 %v1007
      %v1096 = vpop.f32.mrb[0].mxu0
      %v1097 = vadd.f32 %v1004, %v1096
      %v1098 = vpop.f32.mrb[0].mxu0
      %1099 = vmatprep.mubr.f32.mxu0 0.0
      %1100 = vmatmul.mubr.f32.gmra.mrb[0].mxu0 %v1010
      %v1101 = vpop.f32.mrb[0].mxu0
      %v1102 = vadd.f32 %v1004, %v1101
      %v1103 = vpop.f32.mrb[0].mxu0
      %1104 = vmatprep.mubr.f32.mxu0 0.0
      %1105 = vmatmul.mubr.f32.gmra.mrb[0].mxu0 %v1013
      %v1106 = vpop.f32.mrb[0].mxu0
      %v1107 = vadd.f32 %v1004, %v1106
      %v1108 = vpop.f32.mrb[0].mxu0
      %1109 = vmatprep.mubr.f32.mxu0 0.0
      %1110 = vmatmul.mubr.f32.gmra.mrb[0].mxu0 %v1016
      %v1111 = vpop.f32.mrb[0].mxu0
      %v1112 = vadd.f32 %v1004, %v1111
      %v1113 = vpop.f32.mrb[0].mxu0
      %1114 = vmatprep.mubr.f32.mxu0 0.0
      %1115 = vmatmul.mubr.f32.gmra.mrb[0].mxu0 %v1019
      %v1116 = vpop.f32.mrb[0].mxu0
      %v1117 = vadd.f32 %v1004, %v1116
      %v1118 = vpop.f32.mrb[0].mxu0
      %1119 = vmatprep.mubr.f32.mxu0 0.0
      %1120 = vmatmul.mubr.f32.gmra.mrb[0].mxu0 %v1022
      %v1121 = vpop.f32.mrb[0].mxu0
      %v1122 = vadd.f32 %v1004, %v1121
      %v1123 = vpop.f32.mrb[0].mxu0
      %1124 = vmatprep.mubr.f32.mxu0 0.0
      %1125 = vmatmul.mubr.f32.gmra.mrb[0].mxu0 %v1025
      %v1126 = vpop.f32.mrb[0].mxu0
      %v1127 = vadd.f32 %v1004, %v1126
      %v1128 = vpop.f32.mrb[0].mxu0
      %1129 = vmatprep.mubr.f32.mxu0 0.0
      %1130 = vmatmul.mubr.f32.gmra.mrb[0].mxu0 %v1028
      %v1131 = vpop.f32.mrb[0].mxu0
      %v1132 = vadd.f32 %v1004, %v1131
      %v1133 = vpop.f32.mrb[0].mxu0
      %1134 = vdwg.mxu0
      %1143 = vrot.lane.b32.xlu0 %v1097, 32
      %v1144 = vpop.permute.xlu0 %1143
      %1145 = vrot.lane.b32.xlu0 %v1102, 32
      %v1146 = vpop.permute.xlu0 %1145
      %1147 = vrot.lane.b32.xlu0 %v1107, 32
      %v1148 = vpop.permute.xlu0 %1147
      %1149 = vrot.lane.b32.xlu0 %v1112, 32
      %v1150 = vpop.permute.xlu0 %1149
      %1151 = vrot.lane.b32.xlu0 %v1117, 32
      %v1152 = vpop.permute.xlu0 %1151
      %1153 = vrot.lane.b32.xlu0 %v1122, 32
      %v1154 = vpop.permute.xlu0 %1153
      %1155 = vrot.lane.b32.xlu0 %v1127, 32
      %v1156 = vpop.permute.xlu0 %1155
      %1157 = vrot.lane.b32.xlu0 %v1132, 32
      %v1158 = vpop.permute.xlu0 %1157
      %v1167 = vsel %vm396, %v987, %v1144
      %v1168 = vsel %vm396, %v988, %v1146
      %v1169 = vsel %vm396, %v989, %v1148
      %v1170 = vsel %vm396, %v990, %v1150
      %v1171 = vsel %vm396, %v991, %v1152
      %v1172 = vsel %vm396, %v992, %v1154
      %v1173 = vsel %vm396, %v993, %v1156
      %v1174 = vsel %vm396, %v994, %v1158
      %1175 = vst.msk [vmem:[%s379] sm:$0xff] %vm562, %v1167
      %1176 = vst.msk [vmem:[%s379 + $0x8] sm:$0xff] %vm562, %v1168
      %1177 = vst.msk [vmem:[%s379 + $0x10] sm:$0xff] %vm562, %v1169
      %1178 = vst.msk [vmem:[%s379 + $0x18] sm:$0xff] %vm562, %v1170
      %1179 = vst.msk [vmem:[%s379 + $0x20] sm:$0xff] %vm562, %v1171
      %1180 = vst.msk [vmem:[%s379 + $0x28] sm:$0xff] %vm562, %v1172
      %1181 = vst.msk [vmem:[%s379 + $0x30] sm:$0xff] %vm562, %v1173
      %1182 = vst.msk [vmem:[%s379 + $0x38] sm:$0xff] %vm562, %v1174
      %s1183 = smul.u32 8, %s24
      %p1184 = scmp.lt.s32.totalorder %s23, 1
      %s1185 = scalar_select %p1184, %s23, 1
      %p1186 = scmp.lt.s32.totalorder %s1183, 31
      %s1187 = scalar_select %p1186, %s1183, 31
      %s1188 = smul.addr %s1185, 32
      %s1189 = sadd.s32 %s1187, %s1188
      %s1190 = smul.addr %s1189, 8
      %s1191 = scalar_lea.vmem %s8, %s1190
      // Predicated region
      $region57: #{tpu_custom_call.1} parent=51 // pred_check
        %p1192 = pneg %p233
      $region58: #{tpu_custom_call.1} parent=51 // pred_check_branch
        %1194 = sbr.rel (%p1192) target = $region60
      $region59: #{tpu_custom_call.1} parent=51 // pred_region
        %s1195 = smul.u32 8, %s24
      $region60: #{tpu_custom_call.1} parent=51 // pred_fallthru
        _
    $region52: #{tpu_custom_call.1} parent=5 // pred_fallthru
      _
    %p1196 = scmp.le.s32.totalorder 2, %s14
    // Predicated region
    $region61: #{tpu_custom_call.1} parent=5 // pred_check
      %p1197 = pneg %p1196
    $region62: #{tpu_custom_call.1} parent=5 // pred_check_branch
      %1199 = sbr.rel (%p1197) target = $region64
    $region63: #{tpu_custom_call.1} parent=5 // pred_region
      %s1200 = ssub.s32 %s14, 2
      // Predicated region
      $region65: #{tpu_custom_call.1} parent=63 // pred_check
        %p1201 = pneg %p239
      $region66: #{tpu_custom_call.1} parent=63 // pred_check_branch
        %1203 = sbr.rel (%p1201) target = $region68
      $region67: #{tpu_custom_call.1} parent=63 // pred_region
        %s1204 = smul.u32 8, %s26
        %p1205 = scmp.lt.s32.totalorder %s25, 1
        %s1206 = scalar_select %p1205, %s25, 1
        %p1207 = scmp.lt.s32.totalorder %s1204, 31
        %s1208 = scalar_select %p1207, %s1204, 31
        %s1209 = smul.addr %s1206, 32
        %s1210 = sadd.s32 %s1208, %s1209
        %s1211 = smul.addr %s1210, 8
        %s1212 = scalar_lea.vmem %s8, %s1211
      $region68: #{tpu_custom_call.1} parent=63 // pred_fallthru
        _
    $region64: #{tpu_custom_call.1} parent=5 // pred_fallthru
      _
  $region6: #{tpu_custom_call.1} parent=0 // loop_footer
    %s18 = sadd.s32 1, %s14
  $region7: #{tpu_custom_call.1} parent=0 // loop_footer_branch
    %13 = sbr.rel target = $region3
  $region8: #{tpu_custom_call.1} parent=0 // loop_exit
    _

</llo_original>
